<compile_context>
chip_gen: v7x
topology: tpu7x:2x2x1
jax: 0.10.0
libtpu: 0.0.40
codegen_flags: <defaults>
</compile_context>

<pallas_src>
import math

import jax
import jax.numpy as jnp
import numpy as np
from jax import lax
from jax.experimental import pallas as pl
from jax.experimental.pallas import tpu as pltpu

BBOX_XFORM_CLIP = math.log(1000.0 / 16.0)
WEIGHTS = (1.0, 1.0, 1.0, 1.0)  # default weights of offset2bbox (all ones)


def _offset2bbox_kernel(boxes_ref, off_ref, out_ref):
    # boxes_ref: (TILE_N, 4) f32 ; off_ref / out_ref: (TILE_N, C) f32, C = 4*K,
    # channels interleaved (dx, dy, dw, dh) along the lane axis.
    x1 = boxes_ref[:, 0:1]
    y1 = boxes_ref[:, 1:2]
    x2 = boxes_ref[:, 2:3]
    y2 = boxes_ref[:, 3:4]

    # xyxy2xywh (per-row scalars, broadcast over the class/channel lanes)
    w = x2 - x1 + 1.0          # (TILE_N, 1)
    h = y2 - y1 + 1.0
    cx = x1 + 0.5 * w
    cy = y1 + 0.5 * h

    d = off_ref[...]           # (TILE_N, C); weights are all 1.0 -> no divide.
    C = d.shape[1]

    # Lane-constant masks / coefficients, computed at (1, C) so the per-element
    # cost is just the (cheap) sublane broadcast inside the selects.
    col = lax.broadcasted_iota(jnp.int32, (1, C), 1)
    is_x = (col % 2) == 0           # columns 0,2 (mod 4): x-coordinate channels
    is_size = (col % 4) >= 2        # columns 2,3 (mod 4): dw/dh channels
    s = jnp.where(is_size, 0.5, -0.5)   # (1, C) sign/scale of the size term
    b = jnp.where(is_size, -1.0, 0.0)   # (1, C) legacy "-1" on x2/y2 columns

    dim = jnp.where(is_x, w, h)     # per-column box extent, (TILE_N, C)
    ctr = jnp.where(is_x, cx, cy)   # per-column box center

    own_ctr = d * dim + ctr                                  # valid on ctr cols
    own_sz = jnp.exp(jnp.minimum(d, BBOX_XFORM_CLIP)) * dim  # valid on size cols

    # pltpu.roll == np.roll: result[j] = x[(j - shift) % C].
    # Size columns j need pred_ctr from column j-2; center columns j need
    # pred_sz from column j+2.  The circular wrap only touches lanes that are
    # masked out by the selects below.
    ctr_part = jnp.where(is_size, pltpu.roll(own_ctr, 2, axis=1), own_ctr)
    sz_part = jnp.where(is_size, own_sz, pltpu.roll(own_sz, C - 2, axis=1))

    # x1/y1 = pred_ctr - 0.5*pred_sz ; x2/y2 = pred_ctr + 0.5*pred_sz - 1
    out_ref[...] = ctr_part + s * sz_part + b


def bbox_forward(boxes, offset, *, vmem_block_budget_bytes=24 << 20,
                 min_grid_steps=8):
    """Equivalent of Bbox.forward(x=boxes, y=offset)."""
    boxes = jnp.asarray(boxes, jnp.float32)
    offset = jnp.asarray(offset, jnp.float32)
    N, C = offset.shape
    assert C % 4 == 0 and boxes.shape == (N, 4)

    # ---- Tile sizing -------------------------------------------------------
    # Per grid step, the BlockSpec pipeline double-buffers:
    #   offsets in : tile_n * Cpad * 4 bytes
    #   output     : tile_n * Cpad * 4 bytes
    #   boxes      : tile_n * 128  * 4 bytes  ((tile_n, 4) pads to 128 lanes)
    Cpad = max(128, ((C + 127) // 128) * 128)
    bytes_per_row = (2 * Cpad + 128) * 4              # single-buffered bytes/row
    tile_n = (vmem_block_budget_bytes // (2 * bytes_per_row)) // 8 * 8
    tile_n = max(tile_n, 8)

    # Keep the "parallel" grid axis long enough to (a) shard across v7x's two
    # TensorCores and (b) keep the DMA/compute pipeline full for moderate N.
    if N > min_grid_steps * 8:
        cap = -(-N // min_grid_steps)                 # ceil(N / min_grid_steps)
        cap = ((cap + 7) // 8) * 8
        tile_n = min(tile_n, cap)
    tile_n = min(tile_n, ((N + 7) // 8) * 8)
    if N < 8:
        tile_n = N                                    # tiny N: one full block

    grid = (pl.cdiv(N, tile_n),)

    # Scoped-VMEM request: double-buffered footprint + headroom.  Stays well
    # under physical VMEM on every generation (v5e/v6e 128 MiB, v7x 64 MiB).
    footprint = 2 * bytes_per_row * tile_n
    vmem_limit = int(min(56 << 20, max(footprint + (8 << 20), 16 << 20)))

    # Ragged tails (N not a multiple of tile_n) rely on Pallas block clipping:
    # padded rows compute on stale box values (exp is clipped, so no overflow)
    # but are never written back.
    return pl.pallas_call(
        _offset2bbox_kernel,
        out_shape=jax.ShapeDtypeStruct((N, C), jnp.float32),
        grid=grid,
        in_specs=[
            pl.BlockSpec((tile_n, 4), lambda i: (i, 0)),
            pl.BlockSpec((tile_n, C), lambda i: (i, 0)),
        ],
        out_specs=pl.BlockSpec((tile_n, C), lambda i: (i, 0)),
        compiler_params=pltpu.CompilerParams(
            dimension_semantics=("parallel",),
            vmem_limit_bytes=vmem_limit,
        ),
    )(boxes, offset)


def _reference(boxes, offset):
    """Pure-JAX reference mirroring the PyTorch offset2bbox."""
    x1, y1, x2, y2 = boxes[..., 0], boxes[..., 1], boxes[..., 2], boxes[..., 3]
    w = x2 - x1 + 1.0
    h = y2 - y1 + 1.0
    cx = x1 + 0.5 * w
    cy = y1 + 0.5 * h
    dx = offset[:, 0::4]
    dy = offset[:, 1::4]
    dw = jnp.minimum(offset[:, 2::4], BBOX_XFORM_CLIP)
    dh = jnp.minimum(offset[:, 3::4], BBOX_XFORM_CLIP)
    pcx = dx * w[:, None] + cx[:, None]
    pcy = dy * h[:, None] + cy[:, None]
    pw = jnp.exp(dw) * w[:, None]
    ph = jnp.exp(dh) * h[:, None]
    out = jnp.zeros_like(offset)
    out = out.at[:, 0::4].set(pcx - 0.5 * pw)
    out = out.at[:, 1::4].set(pcy - 0.5 * ph)
    out = out.at[:, 2::4].set(pcx + 0.5 * pw - 1.0)
    out = out.at[:, 3::4].set(pcy + 0.5 * ph - 1.0)
    return out


def _make_inputs(key, N, K):
    k1, k2, k3 = jax.random.split(key, 3)
    xy1 = jax.random.uniform(k1, (N, 2), minval=0.0, maxval=50.0)
    wh = jax.random.uniform(k2, (N, 2), minval=1.0, maxval=30.0)
    boxes = jnp.concatenate([xy1, xy1 + wh], axis=-1).astype(jnp.float32)
    offset = jax.random.normal(k3, (N, 4 * K), dtype=jnp.float32)
    return boxes, offset


if __name__ == "__main__":
    key = jax.random.PRNGKey(0)
    k_a, k_b = jax.random.split(key)

    # Case 1: N=256, K=32 -> offsets (256, 128); exercises the multi-step
    # pipelined grid (tile_n is capped so the grid has >= 8 steps).
    boxes, offset = _make_inputs(k_a, 256, 32)
    out = jax.block_until_ready(bbox_forward(boxes, offset))
    ref = jax.block_until_ready(_reference(boxes, offset))
    np.testing.assert_allclose(np.asarray(out), np.asarray(ref),
                               rtol=1e-5, atol=1e-4)

    # Case 2: ragged N=100 (final partial block is clipped by Pallas).
    boxes2, offset2 = _make_inputs(k_b, 100, 32)
    out2 = jax.block_until_ready(bbox_forward(boxes2, offset2))
    ref2 = jax.block_until_ready(_reference(boxes2, offset2))
    np.testing.assert_allclose(np.asarray(out2), np.asarray(ref2),
                               rtol=1e-5, atol=1e-4)

    print("KERNEL_OK")
</pallas_src>

<mosaic_0001>
module attributes {stable_mosaic.version = 11 : i64} {
  func.func @_offset2bbox_kernel(%arg0: i32, %arg1: memref<32x4xf32, #tpu.memory_space<vmem>>, %arg2: memref<32x128xf32, #tpu.memory_space<vmem>>, %arg3: memref<32x128xf32, #tpu.memory_space<vmem>>) attributes {dimension_semantics = [#tpu.dimension_semantics<parallel>], iteration_bounds = array<i64: 8>, scalar_prefetch = 0 : i64, scratch_operands = 0 : i64, tpu.core_type = #tpu.core_type<tc>, window_params = [{transform_indices = @transform_0, window_bounds = array<i64: 32, 4>}, {transform_indices = @transform_1, window_bounds = array<i64: 32, 128>}, {transform_indices = @transform_2, window_bounds = array<i64: 32, 128>}]} {
    %c0 = arith.constant 0 : index
    %c0_0 = arith.constant 0 : index
    %0 = vector.load %arg1[%c0, %c0_0] : memref<32x4xf32, #tpu.memory_space<vmem>>, vector<32x1xf32>
    %c0_1 = arith.constant 0 : index
    %c1 = arith.constant 1 : index
    %1 = vector.load %arg1[%c0_1, %c1] : memref<32x4xf32, #tpu.memory_space<vmem>>, vector<32x1xf32>
    %c0_2 = arith.constant 0 : index
    %c2 = arith.constant 2 : index
    %2 = vector.load %arg1[%c0_2, %c2] : memref<32x4xf32, #tpu.memory_space<vmem>>, vector<32x1xf32>
    %c0_3 = arith.constant 0 : index
    %c3 = arith.constant 3 : index
    %3 = vector.load %arg1[%c0_3, %c3] : memref<32x4xf32, #tpu.memory_space<vmem>>, vector<32x1xf32>
    %4 = arith.subf %2, %0 : vector<32x1xf32>
    %cst = arith.constant 1.000000e+00 : f32
    %5 = vector.broadcast %cst : f32 to vector<32x1xf32>
    %6 = arith.addf %4, %5 : vector<32x1xf32>
    %7 = arith.subf %3, %1 : vector<32x1xf32>
    %cst_4 = arith.constant 1.000000e+00 : f32
    %8 = vector.broadcast %cst_4 : f32 to vector<32x1xf32>
    %9 = arith.addf %7, %8 : vector<32x1xf32>
    %cst_5 = arith.constant 5.000000e-01 : f32
    %10 = vector.broadcast %cst_5 : f32 to vector<32x1xf32>
    %11 = arith.mulf %10, %6 : vector<32x1xf32>
    %12 = arith.addf %0, %11 : vector<32x1xf32>
    %cst_6 = arith.constant 5.000000e-01 : f32
    %13 = vector.broadcast %cst_6 : f32 to vector<32x1xf32>
    %14 = arith.mulf %13, %9 : vector<32x1xf32>
    %15 = arith.addf %1, %14 : vector<32x1xf32>
    %c0_7 = arith.constant 0 : index
    %c0_8 = arith.constant 0 : index
    %16 = vector.load %arg2[%c0_7, %c0_8] : memref<32x128xf32, #tpu.memory_space<vmem>>, vector<32x128xf32>
    %17 = tpu.iota {dimensions = array<i32: 1>} : vector<1x128xi32>
    %c2_i32 = arith.constant 2 : i32
    %c0_i32 = arith.constant 0 : i32
    %18 = arith.cmpi eq, %c2_i32, %c0_i32 : i32
    %c1_i32 = arith.constant 1 : i32
    %19 = arith.select %18, %c1_i32, %c2_i32 : i32
    %20 = vector.broadcast %19 : i32 to vector<1x128xi32>
    %21 = arith.remsi %17, %20 : vector<1x128xi32>
    %c0_i32_9 = arith.constant 0 : i32
    %22 = vector.broadcast %c0_i32_9 : i32 to vector<1x128xi32>
    %23 = arith.cmpi ne, %21, %22 : vector<1x128xi32>
    %c0_i32_10 = arith.constant 0 : i32
    %24 = vector.broadcast %c0_i32_10 : i32 to vector<1x128xi32>
    %25 = arith.cmpi slt, %21, %24 : vector<1x128xi32>
    %c0_i32_11 = arith.constant 0 : i32
    %26 = arith.cmpi slt, %19, %c0_i32_11 : i32
    %27 = vector.broadcast %26 : i1 to vector<1x128xi1>
    %28 = vector.broadcast %27 : vector<1x128xi1> to vector<1x128xi1>
    %29 = arith.xori %25, %28 : vector<1x128xi1>
    %30 = arith.andi %29, %23 : vector<1x128xi1>
    %31 = vector.broadcast %19 : i32 to vector<1x128xi32>
    %32 = arith.addi %21, %31 : vector<1x128xi32>
    %33 = arith.select %30, %32, %21 : vector<1x128xi1>, vector<1x128xi32>
    %c0_i32_12 = arith.constant 0 : i32
    %34 = vector.broadcast %c0_i32_12 : i32 to vector<1x128xi32>
    %35 = arith.cmpi eq, %33, %34 : vector<1x128xi32>
    %c4_i32 = arith.constant 4 : i32
    %c0_i32_13 = arith.constant 0 : i32
    %36 = arith.cmpi eq, %c4_i32, %c0_i32_13 : i32
    %c1_i32_14 = arith.constant 1 : i32
    %37 = arith.select %36, %c1_i32_14, %c4_i32 : i32
    %38 = vector.broadcast %37 : i32 to vector<1x128xi32>
    %39 = arith.remsi %17, %38 : vector<1x128xi32>
    %c0_i32_15 = arith.constant 0 : i32
    %40 = vector.broadcast %c0_i32_15 : i32 to vector<1x128xi32>
    %41 = arith.cmpi ne, %39, %40 : vector<1x128xi32>
    %c0_i32_16 = arith.constant 0 : i32
    %42 = vector.broadcast %c0_i32_16 : i32 to vector<1x128xi32>
    %43 = arith.cmpi slt, %39, %42 : vector<1x128xi32>
    %c0_i32_17 = arith.constant 0 : i32
    %44 = arith.cmpi slt, %37, %c0_i32_17 : i32
    %45 = vector.broadcast %44 : i1 to vector<1x128xi1>
    %46 = vector.broadcast %45 : vector<1x128xi1> to vector<1x128xi1>
    %47 = arith.xori %43, %46 : vector<1x128xi1>
    %48 = arith.andi %47, %41 : vector<1x128xi1>
    %49 = vector.broadcast %37 : i32 to vector<1x128xi32>
    %50 = arith.addi %39, %49 : vector<1x128xi32>
    %51 = arith.select %48, %50, %39 : vector<1x128xi1>, vector<1x128xi32>
    %c2_i32_18 = arith.constant 2 : i32
    %52 = vector.broadcast %c2_i32_18 : i32 to vector<1x128xi32>
    %53 = arith.cmpi sge, %51, %52 : vector<1x128xi32>
    %cst_19 = arith.constant 5.000000e-01 : f32
    %cst_20 = arith.constant -5.000000e-01 : f32
    %54 = vector.broadcast %cst_19 : f32 to vector<1x128xf32>
    %55 = vector.broadcast %cst_20 : f32 to vector<1x128xf32>
    %56 = arith.select %53, %54, %55 : vector<1x128xi1>, vector<1x128xf32>
    %cst_21 = arith.constant -1.000000e+00 : f32
    %cst_22 = arith.constant 0.000000e+00 : f32
    %57 = vector.broadcast %cst_21 : f32 to vector<1x128xf32>
    %58 = vector.broadcast %cst_22 : f32 to vector<1x128xf32>
    %59 = arith.select %53, %57, %58 : vector<1x128xi1>, vector<1x128xf32>
    %60 = vector.shape_cast %35 : vector<1x128xi1> to vector<1x128xi1>
    %61 = vector.broadcast %60 : vector<1x128xi1> to vector<32x128xi1>
    %62 = vector.shape_cast %6 : vector<32x1xf32> to vector<32x1xf32>
    %63 = vector.broadcast %62 : vector<32x1xf32> to vector<32x128xf32>
    %64 = vector.shape_cast %9 : vector<32x1xf32> to vector<32x1xf32>
    %65 = vector.broadcast %64 : vector<32x1xf32> to vector<32x128xf32>
    %66 = arith.select %61, %63, %65 : vector<32x128xi1>, vector<32x128xf32>
    %67 = vector.shape_cast %35 : vector<1x128xi1> to vector<1x128xi1>
    %68 = vector.broadcast %67 : vector<1x128xi1> to vector<32x128xi1>
    %69 = vector.shape_cast %12 : vector<32x1xf32> to vector<32x1xf32>
    %70 = vector.broadcast %69 : vector<32x1xf32> to vector<32x128xf32>
    %71 = vector.shape_cast %15 : vector<32x1xf32> to vector<32x1xf32>
    %72 = vector.broadcast %71 : vector<32x1xf32> to vector<32x128xf32>
    %73 = arith.select %68, %70, %72 : vector<32x128xi1>, vector<32x128xf32>
    %74 = arith.mulf %16, %66 : vector<32x128xf32>
    %75 = arith.addf %74, %73 : vector<32x128xf32>
    %cst_23 = arith.constant 4.13516665 : f32
    %76 = vector.broadcast %cst_23 : f32 to vector<32x128xf32>
    %77 = arith.minimumf %16, %76 : vector<32x128xf32>
    %78 = math.exp %77 : vector<32x128xf32>
    %79 = arith.mulf %78, %66 : vector<32x128xf32>
    %c2_i32_24 = arith.constant 2 : i32
    %80 = tpu.dynamic_rotate %75 by %c2_i32_24 dim 1 : vector<32x128xf32>, i32 -> vector<32x128xf32>
    %81 = vector.shape_cast %53 : vector<1x128xi1> to vector<1x128xi1>
    %82 = vector.broadcast %81 : vector<1x128xi1> to vector<32x128xi1>
    %83 = arith.select %82, %80, %75 : vector<32x128xi1>, vector<32x128xf32>
    %c126_i32 = arith.constant 126 : i32
    %84 = tpu.dynamic_rotate %79 by %c126_i32 dim 1 : vector<32x128xf32>, i32 -> vector<32x128xf32>
    %85 = vector.shape_cast %53 : vector<1x128xi1> to vector<1x128xi1>
    %86 = vector.broadcast %85 : vector<1x128xi1> to vector<32x128xi1>
    %87 = arith.select %86, %79, %84 : vector<32x128xi1>, vector<32x128xf32>
    %88 = vector.broadcast %56 : vector<1x128xf32> to vector<32x128xf32>
    %89 = arith.mulf %88, %87 : vector<32x128xf32>
    %90 = arith.addf %83, %89 : vector<32x128xf32>
    %91 = vector.broadcast %59 : vector<1x128xf32> to vector<32x128xf32>
    %92 = arith.addf %90, %91 : vector<32x128xf32>
    %c0_25 = arith.constant 0 : index
    %c0_26 = arith.constant 0 : index
    %93 = vector.load %arg3[%c0_25, %c0_26] : memref<32x128xf32, #tpu.memory_space<vmem>>, vector<32x128xf32>
    tpu.vector_store %arg3[%c0_25, %c0_26], %92 {strides = array<i32>} : memref<32x128xf32, #tpu.memory_space<vmem>>, vector<32x128xf32>,
    return
  }
  func.func @transform_0(%arg0: i32) -> (i32, i32) {
    %c0_i32 = arith.constant 0 : i32
    %c0_i32_0 = arith.constant 0 : i32
    return %arg0, %c0_i32 : i32, i32
  }
  func.func @transform_1(%arg0: i32) -> (i32, i32) {
    %c0_i32 = arith.constant 0 : i32
    %c0_i32_0 = arith.constant 0 : i32
    return %arg0, %c0_i32 : i32, i32
  }
  func.func @transform_2(%arg0: i32) -> (i32, i32) {
    %c0_i32 = arith.constant 0 : i32
    %c0_i32_0 = arith.constant 0 : i32
    return %arg0, %c0_i32 : i32, i32
  }
}

</mosaic_0001>

<llo_original>
// kernel: tpu_custom_call.1
$region0: #{tpu_custom_call.1}
  #allocation0 [shape = 'u32[]', space=smem, size = 0x4, offset = 0x4, fixed_abs, tag = 'smem constant byte address 0x4 - core index']
  #allocation1 [shape = 'u32[144,128]{1,0:T(1,128)}', space=vmem, size = 0x12000, scoped, tag = 'internal scratch']
  %s0 = inlined_call_operand.vmem [shape: f32[256,4], index: 0, kind: input, shape index: {}]
  %s1 = inlined_call_operand.vmem [shape: f32[256,128], index: 1, kind: input, shape index: {}]
  %s2 = inlined_call_operand.hbm [shape: f32[256,128], index: 2, kind: output, shape index: {}]
  %s3 = sld [smem:[#allocation0]]
  $region41: #{tpu_custom_call.1} parent=0
    _
  %s5 = ssub.s32 1, %s3
  %s6 = scalar_select 0, %s5, %s3
  $region1: #{tpu_custom_call.1} parent=0
    #allocation2 [shape = 'u8[32768]{0}', space=vmem, size = 0x8000, scoped, tag = 'output window, operand 0']
    #allocation3 [shape = 's32[2]{0}', space=sflag, size = 0x8, scoped, tag = 'scoped memory for tpu_custom_call.1']
    %7 = vsyncpa [#allocation3], 0
    %s8 = scalar_lea.sflag [#allocation3], 1
    %9 = vsyncpa %s8, 0
    loop: start=0, step=1, limit=10
    $region2: #{tpu_custom_call.1} parent=1 // loop_pre_header
      _
    $region3: #{tpu_custom_call.1} parent=1 // loop_header
      %s11 = sphi 0, %s15
      %p12 = scmp.ge.s32.totalorder %s11, 10
      %s21 = sphi 0, %s23
      %s24 = sphi 0, %s21
      %s25 = sphi 0, %s24
      %s41 = sphi 0, %s25
      %s47 = sphi 0, %s49
      %s50 = sphi 0, %s47
      %s51 = sphi 0, %s50
      %s67 = sphi 0, %s51
      %s73 = sphi 0, %s75
      %s76 = sphi 0, %s73
      %s77 = sphi 0, %s76
      %s93 = sphi 0, %s77
    $region4: #{tpu_custom_call.1} parent=1 // loop_header_branch
      %14 = sbr.rel (%p12) target = $region8
    $region5: #{tpu_custom_call.1} parent=1 // loop_body
      %s16 = ssub.s32 %s11, 1
      %s17 = ssub.s32 %s11, 2
      %s18 = sadd.s32 %s11, 1
      %s19 = ssub.s32 %s11, %s18
      %p20 = scmp.eq.s32.totalorder %s19, 0
      %s22 = sadd.s32 %s21, 1
      %s23 = scalar_select %p20, %s21, %s22
      %p26 = pneg %p20
      %p27 = scmp.eq.s32.totalorder %s11, 7
      %p28 = por %p26, %p27
      %p29 = scmp.ne.s32.totalorder %s21, %s24
      %p30 = scmp.eq.s32.totalorder %s11, 0
      %p31 = por %p29, %p30
      %p32 = scmp.ne.s32.totalorder %s21, %s24
      %p33 = scmp.eq.s32.totalorder %s16, 7
      %p34 = por %p32, %p33
      %p35 = scmp.ne.s32.totalorder %s24, %s25
      %p36 = scmp.eq.s32.totalorder %s16, 0
      %p37 = por %p35, %p36
      %p38 = scmp.ne.s32.totalorder %s24, %s25
      %p39 = scmp.eq.s32.totalorder %s17, 7
      %p40 = por %p38, %p39
      %p42 = scmp.ne.s32.totalorder %s25, %s41
      %p43 = scmp.eq.s32.totalorder %s17, 0
      %p44 = por %p42, %p43
      %s45 = ssub.s32 %s11, %s18
      %p46 = scmp.eq.s32.totalorder %s45, 0
      %s48 = sadd.s32 %s47, 1
      %s49 = scalar_select %p46, %s47, %s48
      %p52 = pneg %p46
      %p53 = scmp.eq.s32.totalorder %s11, 7
      %p54 = por %p52, %p53
      %p55 = scmp.ne.s32.totalorder %s47, %s50
      %p56 = scmp.eq.s32.totalorder %s11, 0
      %p57 = por %p55, %p56
      %p58 = scmp.ne.s32.totalorder %s47, %s50
      %p59 = scmp.eq.s32.totalorder %s16, 7
      %p60 = por %p58, %p59
      %p61 = scmp.ne.s32.totalorder %s50, %s51
      %p62 = scmp.eq.s32.totalorder %s16, 0
      %p63 = por %p61, %p62
      %p64 = scmp.ne.s32.totalorder %s50, %s51
      %p65 = scmp.eq.s32.totalorder %s17, 7
      %p66 = por %p64, %p65
      %p68 = scmp.ne.s32.totalorder %s51, %s67
      %p69 = scmp.eq.s32.totalorder %s17, 0
      %p70 = por %p68, %p69
      %s71 = ssub.s32 %s11, %s18
      %p72 = scmp.eq.s32.totalorder %s71, 0
      %s74 = sadd.s32 %s73, 1
      %s75 = scalar_select %p72, %s73, %s74
      %p78 = pneg %p72
      %p79 = scmp.eq.s32.totalorder %s11, 7
      %p80 = por %p78, %p79
      %p81 = scmp.ne.s32.totalorder %s73, %s76
      %p82 = scmp.eq.s32.totalorder %s11, 0
      %p83 = por %p81, %p82
      %p84 = scmp.ne.s32.totalorder %s73, %s76
      %p85 = scmp.eq.s32.totalorder %s16, 7
      %p86 = por %p84, %p85
      %p87 = scmp.ne.s32.totalorder %s76, %s77
      %p88 = scmp.eq.s32.totalorder %s16, 0
      %p89 = por %p87, %p88
      %p90 = scmp.ne.s32.totalorder %s76, %s77
      %p91 = scmp.eq.s32.totalorder %s17, 7
      %p92 = por %p90, %p91
      %p94 = scmp.ne.s32.totalorder %s77, %s93
      %p95 = scmp.eq.s32.totalorder %s17, 0
      %p96 = por %p94, %p95
      %p97 = scmp.le.s32.totalorder 1, %s11
      %p98 = scmp.lt.s32.totalorder %s11, 9
      %p99 = pnand %p97, %p98
      %p100 = pneg %p99
      // Predicated region
      $region9: #{tpu_custom_call.1} parent=5 // pred_check
        _
      $region10: #{tpu_custom_call.1} parent=5 // pred_check_branch
        %102 = sbr.rel (%p99) target = $region12
      $region11: #{tpu_custom_call.1} parent=5 // pred_region
        %s103 = ssub.s32 %s11, 1
      $region12: #{tpu_custom_call.1} parent=5 // pred_fallthru
        _
      %p104 = scmp.lt.s32.totalorder %s11, 8
      // Predicated region
      $region13: #{tpu_custom_call.1} parent=5 // pred_check
        %p105 = pneg %p104
      $region14: #{tpu_custom_call.1} parent=5 // pred_check_branch
        %107 = sbr.rel (%p105) target = $region16
      $region15: #{tpu_custom_call.1} parent=5 // pred_region
        // Predicated region
        $region17: #{tpu_custom_call.1} parent=15 // pred_check
          %p108 = pneg %p31
        $region18: #{tpu_custom_call.1} parent=15 // pred_check_branch
          %110 = sbr.rel (%p108) target = $region20
        $region19: #{tpu_custom_call.1} parent=15 // pred_region
          %s111 = smul.u32 4, %s11
          %p112 = scmp.lt.s32.totalorder %s111, 31
          %s113 = scalar_select %p112, %s111, 31
          %s114 = smul.addr %s113, 8
          %s115 = scalar_lea.vmem %s0, %s114
          %s116 = smul.u32 4, %s11
        $region20: #{tpu_custom_call.1} parent=15 // pred_fallthru
          _
        // Predicated region
        $region21: #{tpu_custom_call.1} parent=15 // pred_check
          %p117 = pneg %p57
        $region22: #{tpu_custom_call.1} parent=15 // pred_check_branch
          %119 = sbr.rel (%p117) target = $region24
        $region23: #{tpu_custom_call.1} parent=15 // pred_region
          %s120 = smul.u32 4, %s11
          %p121 = scmp.lt.s32.totalorder %s120, 31
          %s122 = scalar_select %p121, %s120, 31
          %s123 = smul.addr %s122, 8
          %s124 = scalar_lea.vmem %s1, %s123
          %s125 = smul.u32 4, %s11
        $region24: #{tpu_custom_call.1} parent=15 // pred_fallthru
          _
      $region16: #{tpu_custom_call.1} parent=5 // pred_fallthru
        _
      %p126 = scmp.le.s32.totalorder 1, %s11
      %p127 = scmp.lt.s32.totalorder %s11, 9
      %p128 = pnand %p126, %p127
      %p129 = pneg %p128
      // Predicated region
      $region25: #{tpu_custom_call.1} parent=5 // pred_check
        _
      $region26: #{tpu_custom_call.1} parent=5 // pred_check_branch
        %131 = sbr.rel (%p128) target = $region28
      $region27: #{tpu_custom_call.1} parent=5 // pred_region
        %s132 = ssub.s32 %s11, 1
        %s133 = smul.u32 4, %s16
        %p134 = scmp.lt.s32.totalorder %s133, 31
        %s135 = scalar_select %p134, %s133, 31
        %s136 = smul.addr %s135, 8
        %s137 = scalar_lea.vmem %s0, %s136
        %p138 = pneg %p37
        %p139 = pneg %p34
        %s140 = smul.u32 4, %s16
        %p141 = scmp.lt.s32.totalorder %s140, 31
        %s142 = scalar_select %p141, %s140, 31
        %s143 = smul.addr %s142, 8
        %s144 = scalar_lea.vmem %s1, %s143
        %p145 = pneg %p63
        %p146 = pneg %p60
        %p147 = pneg %p89
        %p148 = pneg %p86
        %s149 = sand.u32 %s76, 1
        %s150 = scalar_lea.sflag [#allocation3], %s149
        %s151 = sand.u32 %s76, 1
        %s152 = smul.addr %s151, 32
        %s153 = scalar_lea.vmem [#allocation2], %s152
        %s154 = smul.u32 4, %s16
        %p155 = scmp.lt.s32.totalorder %s154, 31
        %s156 = scalar_select %p155, %s154, 31
        %s157 = smul.addr %s156, 8
        %s158 = scalar_lea.vmem %s0, %s157
        %s159 = smul.u32 4, %s16
        %s160 = smul.u32 4, %s16
        %p161 = scmp.lt.s32.totalorder %s160, 31
        %s162 = scalar_select %p161, %s160, 31
        %s163 = smul.addr %s162, 8
        %s164 = scalar_lea.vmem %s1, %s163
        %s165 = smul.u32 4, %s16
        %s166 = smul.u32 4, %s16
        %v167 = vld [vmem:[%s158] sm:$0xff]
        %v168 = vld [vmem:[%s158 + $0x8] sm:$0xff]
        %v169 = vld [vmem:[%s158 + $0x10] sm:$0xff]
        %v170 = vld [vmem:[%s158 + $0x18] sm:$0xff]
        %175 = vrot.lane.b32.xlu0 %v167, 2
        %v176 = vpop.permute.xlu0 %175
        %177 = vrot.lane.b32.xlu0 %v168, 2
        %v178 = vpop.permute.xlu0 %177
        %179 = vrot.lane.b32.xlu0 %v169, 2
        %v180 = vpop.permute.xlu0 %179
        %181 = vrot.lane.b32.xlu0 %v170, 2
        %v182 = vpop.permute.xlu0 %181
        %v187 = vsub.f32 %v167, %v176
        %v188 = vsub.f32 %v168, %v178
        %v189 = vsub.f32 %v169, %v180
        %v190 = vsub.f32 %v170, %v182
        %v191 = vadd.f32 %v187, 1.0
        %v192 = vadd.f32 %v188, 1.0
        %v193 = vadd.f32 %v189, 1.0
        %v194 = vadd.f32 %v190, 1.0
        %v195 = vmul.f32 %v191, 0.5
        %v196 = vmul.f32 %v192, 0.5
        %v197 = vmul.f32 %v193, 0.5
        %v198 = vmul.f32 %v194, 0.5
        %203 = vrot.lane.b32.xlu0 %v195, 126
        %v204 = vpop.permute.xlu0 %203
        %205 = vrot.lane.b32.xlu0 %v196, 126
        %v206 = vpop.permute.xlu0 %205
        %207 = vrot.lane.b32.xlu0 %v197, 126
        %v208 = vpop.permute.xlu0 %207
        %209 = vrot.lane.b32.xlu0 %v198, 126
        %v210 = vpop.permute.xlu0 %209
        %v215 = vadd.f32 %v167, %v204
        %v216 = vadd.f32 %v168, %v206
        %v217 = vadd.f32 %v169, %v208
        %v218 = vadd.f32 %v170, %v210
        %v219 = vld [vmem:[%s164] sm:$0xff]
        %v220 = vld [vmem:[%s164 + $0x8] sm:$0xff]
        %v221 = vld [vmem:[%s164 + $0x10] sm:$0xff]
        %v222 = vld [vmem:[%s164 + $0x18] sm:$0xff]
        %v223 = vlaneseq
        %v224 = vand.u32 %v223, 127
        %vm225 = vcmp.lt.s32.totalorder %v224, 0
        %v226 = vsub.s32 0, %v224
        %v227 = vsel %vm225, %v226, %v224
        %v228 = vshrl.u32 %v227, 1
        %v229 = vand.u32 %v227, 1
        %v230 = vsub.s32 0, %v229
        %v231 = vsel %vm225, %v230, %v229
        %vm232 = vcmp.ne.s32.totalorder %v231, 0
        %vm233 = vcmp.lt.s32.totalorder %v231, 0
        %vm234 = vmand %vm233, %vm232
        %v235 = vadd.s32 %v231, 2
        %v236 = vsel %vm234, %v235, %v231
        %vm237 = vcmp.eq.s32.totalorder %v236, 0
        %vm238 = vcmp.lt.s32.totalorder %v224, 0
        %v239 = vsub.s32 0, %v224
        %v240 = vsel %vm238, %v239, %v224
        %v241 = vshrl.u32 %v240, 2
        %v242 = vand.u32 %v240, 3
        %v243 = vsub.s32 0, %v242
        %v244 = vsel %vm238, %v243, %v242
        %vm245 = vcmp.ne.s32.totalorder %v244, 0
        %vm246 = vcmp.lt.s32.totalorder %v244, 0
        %vm247 = vmand %vm246, %vm245
        %v248 = vadd.s32 %v244, 4
        %v249 = vsel %vm247, %v248, %v244
        %vm250 = vcmp.ge.s32.totalorder %v249, 2
        %v251 = vsel %vm250, 0.5, -0.5
        %v252 = vsel %vm250, -1.0, 0.0
        %v253 = vsel %vm237, 1, 0
        %vm254 = vcmp.eq.s32.totalorder %v253, 1
        %256 = vset.pattern.permute.xlu0 2
        %257 = vperm.xlu0 %256, %v191
        %v258 = vpop.permute.xlu0 %257
        %261 = vset.pattern.permute.xlu0 2
        %262 = vperm.xlu0 %261, %v192
        %v263 = vpop.permute.xlu0 %262
        %266 = vset.pattern.permute.xlu0 2
        %267 = vperm.xlu0 %266, %v193
        %v268 = vpop.permute.xlu0 %267
        %271 = vset.pattern.permute.xlu0 2
        %272 = vperm.xlu0 %271, %v194
        %v273 = vpop.permute.xlu0 %272
        %275 = vset.pattern.permute.xlu0 3
        %276 = vperm.xlu0 %275, %v191
        %v277 = vpop.permute.xlu0 %276
        %279 = vset.pattern.permute.xlu0 3
        %280 = vperm.xlu0 %279, %v192
        %v281 = vpop.permute.xlu0 %280
        %283 = vset.pattern.permute.xlu0 3
        %284 = vperm.xlu0 %283, %v193
        %v285 = vpop.permute.xlu0 %284
        %287 = vset.pattern.permute.xlu0 3
        %288 = vperm.xlu0 %287, %v194
        %v289 = vpop.permute.xlu0 %288
        %v291 = vsel %vm254, %v258, %v277
        %v292 = vsel %vm254, %v263, %v281
        %v293 = vsel %vm254, %v268, %v285
        %v294 = vsel %vm254, %v273, %v289
        %296 = vset.pattern.permute.xlu0 0
        %297 = vperm.xlu0 %296, %v215
        %v298 = vpop.permute.xlu0 %297
        %301 = vset.pattern.permute.xlu0 0
        %302 = vperm.xlu0 %301, %v216
        %v303 = vpop.permute.xlu0 %302
        %306 = vset.pattern.permute.xlu0 0
        %307 = vperm.xlu0 %306, %v217
        %v308 = vpop.permute.xlu0 %307
        %311 = vset.pattern.permute.xlu0 0
        %312 = vperm.xlu0 %311, %v218
        %v313 = vpop.permute.xlu0 %312
        %315 = vset.pattern.permute.xlu0 1
        %316 = vperm.xlu0 %315, %v215
        %v317 = vpop.permute.xlu0 %316
        %319 = vset.pattern.permute.xlu0 1
        %320 = vperm.xlu0 %319, %v216
        %v321 = vpop.permute.xlu0 %320
        %323 = vset.pattern.permute.xlu0 1
        %324 = vperm.xlu0 %323, %v217
        %v325 = vpop.permute.xlu0 %324
        %327 = vset.pattern.permute.xlu0 1
        %328 = vperm.xlu0 %327, %v218
        %v329 = vpop.permute.xlu0 %328
        %v331 = vsel %vm254, %v298, %v317
        %v332 = vsel %vm254, %v303, %v321
        %v333 = vsel %vm254, %v308, %v325
        %v334 = vsel %vm254, %v313, %v329
        %v335 = vmul.f32 %v219, %v291
        %v336 = vmul.f32 %v220, %v292
        %v337 = vmul.f32 %v221, %v293
        %v338 = vmul.f32 %v222, %v294
        %v339 = vadd.f32 %v335, %v331
        %v340 = vadd.f32 %v336, %v332
        %v341 = vadd.f32 %v337, %v333
        %v342 = vadd.f32 %v338, %v334
        %v343 = vmin.f32 %v219, 4.1351666
        %v344 = vmin.f32 %v220, 4.1351666
        %v345 = vmin.f32 %v221, 4.1351666
        %v346 = vmin.f32 %v222, 4.1351666
        %v347 = vmul.f32 %v343, 1.442695
        %v348 = vpow.pop %v347
        %v349 = vmul.f32 %v344, 1.442695
        %v350 = vpow.pop %v349
        %v351 = vmul.f32 %v345, 1.442695
        %v352 = vpow.pop %v351
        %v353 = vmul.f32 %v346, 1.442695
        %v354 = vpow.pop %v353
        %v355 = vmul.f32 %v348, %v291
        %v356 = vmul.f32 %v350, %v292
        %v357 = vmul.f32 %v352, %v293
        %v358 = vmul.f32 %v354, %v294
        %359 = vrot.lane.b32.xlu0 %v339, 2
        %v360 = vpop.permute.xlu0 %359
        %361 = vrot.lane.b32.xlu0 %v340, 2
        %v362 = vpop.permute.xlu0 %361
        %363 = vrot.lane.b32.xlu0 %v341, 2
        %v364 = vpop.permute.xlu0 %363
        %365 = vrot.lane.b32.xlu0 %v342, 2
        %v366 = vpop.permute.xlu0 %365
        %v367 = vsel %vm250, 1, 0
        %vm368 = vcmp.eq.s32.totalorder %v367, 1
        %v369 = vsel %vm368, %v360, %v339
        %v370 = vsel %vm368, %v362, %v340
        %v371 = vsel %vm368, %v364, %v341
        %v372 = vsel %vm368, %v366, %v342
        %373 = vrot.lane.b32.xlu0 %v355, 126
        %v374 = vpop.permute.xlu0 %373
        %375 = vrot.lane.b32.xlu0 %v356, 126
        %v376 = vpop.permute.xlu0 %375
        %377 = vrot.lane.b32.xlu0 %v357, 126
        %v378 = vpop.permute.xlu0 %377
        %379 = vrot.lane.b32.xlu0 %v358, 126
        %v380 = vpop.permute.xlu0 %379
        %v381 = vsel %vm368, %v355, %v374
        %v382 = vsel %vm368, %v356, %v376
        %v383 = vsel %vm368, %v357, %v378
        %v384 = vsel %vm368, %v358, %v380
        %v385 = vmul.f32 %v251, %v381
        %v386 = vmul.f32 %v251, %v382
        %v387 = vmul.f32 %v251, %v383
        %v388 = vmul.f32 %v251, %v384
        %v389 = vadd.f32 %v369, %v385
        %v390 = vadd.f32 %v370, %v386
        %v391 = vadd.f32 %v371, %v387
        %v392 = vadd.f32 %v372, %v388
        %v393 = vadd.f32 %v389, %v252
        %v394 = vadd.f32 %v390, %v252
        %v395 = vadd.f32 %v391, %v252
        %v396 = vadd.f32 %v392, %v252
        %397 = vst [vmem:[%s153] sm:$0xff] %v393
        %398 = vst [vmem:[%s153 + $0x8] sm:$0xff] %v394
        %399 = vst [vmem:[%s153 + $0x10] sm:$0xff] %v395
        %400 = vst [vmem:[%s153 + $0x18] sm:$0xff] %v396
        %s401 = sand.u32 %s76, 1
        %s402 = scalar_lea.sflag [#allocation3], %s401
        %s403 = sand.u32 %s76, 1
        %s404 = smul.addr %s403, 32
        %s405 = scalar_lea.vmem [#allocation2], %s404
        // Predicated region
        $region29: #{tpu_custom_call.1} parent=27 // pred_check
          %p406 = pneg %p86
        $region30: #{tpu_custom_call.1} parent=27 // pred_check_branch
          %408 = sbr.rel (%p406) target = $region32
        $region31: #{tpu_custom_call.1} parent=27 // pred_region
          %s409 = smul.u32 4, %s16
          %s411 = ssub.s32 512, 512
          %412 = vsyncadd %s402, %s411
          %s413 = smul.addr %s409, 128
          %s414 = scalar_lea.hbm %s2, %s413
          %s415 = sshll.u32 %s405, 4
          %s416 = int_to_ptr.vmem [resolvable:$true] %s415
          %421 = dma.vmem_to_hbm [thread:$0]  %s416, 512, %s414, %s402, 128, 128, 8
        $region32: #{tpu_custom_call.1} parent=27 // pred_fallthru
          _
      $region28: #{tpu_custom_call.1} parent=5 // pred_fallthru
        _
      %p422 = scmp.le.s32.totalorder 2, %s11
      // Predicated region
      $region33: #{tpu_custom_call.1} parent=5 // pred_check
        %p423 = pneg %p422
      $region34: #{tpu_custom_call.1} parent=5 // pred_check_branch
        %425 = sbr.rel (%p423) target = $region36
      $region35: #{tpu_custom_call.1} parent=5 // pred_region
        %s426 = ssub.s32 %s11, 2
        // Predicated region
        $region37: #{tpu_custom_call.1} parent=35 // pred_check
          %p427 = pneg %p92
        $region38: #{tpu_custom_call.1} parent=35 // pred_check_branch
          %429 = sbr.rel (%p427) target = $region40
        $region39: #{tpu_custom_call.1} parent=35 // pred_region
          %s430 = sand.u32 %s77, 1
          %s431 = scalar_lea.sflag [#allocation3], %s430
          %s432 = sand.u32 %s77, 1
          %s433 = smul.addr %s432, 32
          %s434 = scalar_lea.vmem [#allocation2], %s433
          %435 = dma.done %s431, 512
        $region40: #{tpu_custom_call.1} parent=35 // pred_fallthru
          _
      $region36: #{tpu_custom_call.1} parent=5 // pred_fallthru
        _
    $region6: #{tpu_custom_call.1} parent=1 // loop_footer
      %s15 = sadd.s32 1, %s11
    $region7: #{tpu_custom_call.1} parent=1 // loop_footer_branch
      %10 = sbr.rel target = $region3
    $region8: #{tpu_custom_call.1} parent=1 // loop_exit
      _
    %436 = vsyncpa [#allocation3], 1
    %s437 = scalar_lea.sflag [#allocation3], 1
    %438 = vsyncpa %s437, 1

</llo_original>
